<compile_context>
chip_gen: v7x
topology: tpu7x:2x2x1
jax: 0.10.0
libtpu: 0.0.40
codegen_flags: <defaults>
</compile_context>

<pallas_src>
from functools import partial

import jax
import jax.numpy as jnp
from jax.experimental import pallas as pl
from jax.experimental.pallas import tpu as pltpu

EPS = 1e-5
_CB = 8            # batch rows per elementwise sub-chunk (= f32 sublane tile)


def _round_up(x, m):
    return (x + m - 1) // m * m


def _make_kernel(BB, T, KP, sigmoid_bf16):
    rows = _CB * T
    n_chunks = BB // _CB

    def kernel(h_ref, wv_ref, bnc_ref, kpk_ref, y_ref, z_ref):
        # h_ref  : (BB*T, H)  f32   rows of batch block b (batch x time folded)
        # wv_ref : (H, KP)    bf16  resident
        # bnc_ref: (CB*T, 3)  f32   [scale_v, scale_f, shift_f], tiled over CB
        # kpk_ref: (3, KP)    f32   [bias, softmax pad mask(-1e30), den fix(+1)]
        # y_ref  : (BB, KP)   f32
        # z_ref  : (BB*T, KP) f32   VMEM scratch holding z = h @ Wv + b

        # --- one fat MXU matmul for the whole batch block (f32 accumulate);
        #     bf16 cast done here so h travels HBM->VMEM as plain f32 (4 B/el)
        hb = h_ref[...].astype(jnp.bfloat16)
        z_ref[...] = (jnp.dot(hb, wv_ref[...],
                              preferred_element_type=jnp.float32)
                      + kpk_ref[0:1, :])                  # K-padded bias (zeros)

        sv = bnc_ref[:, 0:1]          # (CB*T, 1) softmax-branch BN scale
        sf = bnc_ref[:, 1:2]          # sigmoid-branch BN scale
        shf = bnc_ref[:, 2:3]         # sigmoid-branch BN shift
        neg = kpk_ref[1:2, :]         # (1, KP) additive -1e30 on K-pad lanes
        dfx = kpk_ref[2:3, :]         # (1, KP) +1 on K-pad lanes (avoid 1/0)
        if sigmoid_bf16:              # v6e/v7x: bf16 EUP/VPU on sigmoid branch
            sf = sf.astype(jnp.bfloat16)
            shf = shf.astype(jnp.bfloat16)

        # --- chunk the elementwise phase over 8 batch rows (= CB*T z rows)
        #     to bound the live vreg set; z is re-read from the VMEM scratch.
        def chunk(c, carry):
            r0 = pl.multiple_of(c * rows, 8)
            zc = z_ref[pl.ds(r0, rows), :]                       # (CB*T, KP) f32
            # softmax branch: BN shift dropped (softmax-invariant over K)
            zv = zc * sv + neg
            # sigmoid branch (bf16 on v6e/v7x, f32 on v5e)
            zf = (zc.astype(jnp.bfloat16) if sigmoid_bf16 else zc) * sf + shf
            cla = jax.nn.sigmoid(zf).astype(jnp.float32)
            # softmax over K (dim=2), kept unnormalized over T
            m = jnp.max(zv, axis=-1, keepdims=True)
            e = jnp.exp(zv - m)
            att = e * pl.reciprocal(jnp.sum(e, axis=-1, keepdims=True),
                                    approx=True)                 # EUP slot
            # y = sum_T(cla*att) / sum_T(att)  (norm_att folded into one divide)
            # NOTE: reshape is layout-free when T % 8 == 0 (sublane aligned).
            num = jnp.sum((cla * att).reshape(_CB, T, KP), axis=1)   # (CB, KP)
            den = jnp.sum(att.reshape(_CB, T, KP), axis=1) + dfx
            o0 = pl.multiple_of(c * _CB, 8)
            y_ref[pl.ds(o0, _CB), :] = num / den      # exact divide on output
            return carry

        jax.lax.fori_loop(0, n_chunks, chunk, 0, unroll=True)

    return kernel


@partial(jax.jit, static_argnames=("block_b",))
def attention_module(h, params, *, block_b=None):
    """h: (B, T, H) float32 -> y: (B, K) float32."""
    B, T, H = h.shape
    K = params["wv"].shape[1]
    KP = _round_up(K, 128)                       # lane-dense output / MXU N

    # ---- pick the batch block size BB (multiple of 8) ----
    if block_b is None:
        BB = _round_up(max(_CB, -(-256 // T)), _CB)   # >= 256 matmul rows/step
    else:
        BB = _round_up(block_b, _CB)
    BB = min(BB, _round_up(B, _CB))

    def vmem_est(bb):
        return (2 * bb * T * H * 4            # h block (f32, double-buffered)
                + bb * T * KP * 4             # z scratch
                + 2 * bb * KP * 4             # y block (double-buffered)
                + 2 * H * KP * 2              # Wv (bf16, double-buffered)
                + 2 * (_CB * T * 3 + 3 * KP) * 4)
    while BB > _CB and vmem_est(BB) > (24 << 20):
        BB -= _CB
    nb = -(-B // BB)        # grid steps; ragged edge block just over-reads h,
                            # the extra output rows are sliced off below.

    # ---- per-generation knobs ----
    kind = jax.devices()[0].device_kind.lower()
    sigmoid_bf16 = ("v6" in kind) or ("v7" in kind)   # v5e has no bf16 VPU/EUP
    if ("v7" in kind) and nb >= 2 and nb % 2 == 0:
        dim_sem = (pltpu.CORE_PARALLEL,)      # engage both v7x TensorCores
    else:
        dim_sem = ("parallel",)
    vmem_limit = int(min(max(32 << 20, 2 * vmem_est(BB)), 64 << 20))

    # ---- tiny, jit-fused parameter preprocessing (never touches h) ----
    # BatchNorm1d(T) eval-mode affine; softmax-branch shift dropped (invariant).
    sv = params["gv"] * jax.lax.rsqrt(params["vv"] + EPS)
    sf = params["gf"] * jax.lax.rsqrt(params["vf"] + EPS)
    shf = params["bef"] - params["mf"] * sf
    bnc = jnp.tile(jnp.stack([sv, sf, shf], axis=1),
                   (_CB, 1)).astype(jnp.float32)              # (CB*T, 3)

    wv = jnp.pad(params["wv"], ((0, 0), (0, KP - K))).astype(jnp.bfloat16)
    bias = jnp.pad(params["bv"], (0, KP - K)).astype(jnp.float32)
    lane = jnp.arange(KP)
    neg = jnp.where(lane < K, 0.0, -1e30).astype(jnp.float32)
    dfx = jnp.where(lane < K, 0.0, 1.0).astype(jnp.float32)
    kpack = jnp.stack([bias, neg, dfx], axis=0)               # (3, KP)

    # h: metadata-only reshape under jit; stays f32 in HBM, cast in-kernel.
    h2 = h.reshape(B * T, H)

    kernel = _make_kernel(BB, T, KP, sigmoid_bf16)

    y_pad = pl.pallas_call(
        kernel,
        out_shape=jax.ShapeDtypeStruct((nb * BB, KP), jnp.float32),
        grid_spec=pltpu.PrefetchScalarGridSpec(
            num_scalar_prefetch=0,
            grid=(nb,),
            in_specs=[
                pl.BlockSpec((BB * T, H), lambda b: (b, 0)),   # h rows (f32)
                pl.BlockSpec((H, KP), lambda b: (0, 0)),       # Wv bf16 (resident)
                pl.BlockSpec((_CB * T, 3), lambda b: (0, 0)),  # BN affine pack
                pl.BlockSpec((3, KP), lambda b: (0, 0)),       # bias + K-pad masks
            ],
            out_specs=pl.BlockSpec((BB, KP), lambda b: (b, 0)),
            scratch_shapes=[pltpu.VMEM((BB * T, KP), jnp.float32)],
        ),
        compiler_params=pltpu.CompilerParams(
            dimension_semantics=dim_sem,
            vmem_limit_bytes=vmem_limit),
    )(h2, wv, bnc, kpack)

    return y_pad[:B, :K]


def init_params(key, H, K, T):
    ks = jax.random.split(key, 10)
    bound = 1.0 / jnp.sqrt(H)
    wv = jax.random.uniform(ks[0], (H, K), jnp.float32, -bound, bound)
    bv = jax.random.uniform(ks[1], (K,), jnp.float32, -bound, bound)
    # Non-default BatchNorm stats/affine so the test actually exercises the
    # folded-affine and softmax-shift-invariance paths.
    gv = jax.random.uniform(ks[2], (T,), jnp.float32, 0.5, 1.5)
    bev = 0.1 * jax.random.normal(ks[3], (T,), jnp.float32)
    mv = 0.1 * jax.random.normal(ks[4], (T,), jnp.float32)
    vv = jax.random.uniform(ks[5], (T,), jnp.float32, 0.5, 1.5)
    gf = jax.random.uniform(ks[6], (T,), jnp.float32, 0.5, 1.5)
    bef = 0.1 * jax.random.normal(ks[7], (T,), jnp.float32)
    mf = 0.1 * jax.random.normal(ks[8], (T,), jnp.float32)
    vf = jax.random.uniform(ks[9], (T,), jnp.float32, 0.5, 1.5)
    # TODO(synk): fcf Linear exists in the PyTorch __init__ but is unused in
    # forward (fcv is applied twice), so its weights are omitted here.
    return dict(wv=wv, bv=bv,
                gv=gv, bev=bev, mv=mv, vv=vv,
                gf=gf, bef=bef, mf=mf, vf=vf)


def reference(h, p):
    """Pure-f32 JAX reference faithful to the PyTorch forward (eval-mode BN)."""
    z = jnp.einsum("bth,hk->btk", h, p["wv"]) + p["bv"]

    def bn(x, g, b, m, v):
        return ((x - m[None, :, None]) * jax.lax.rsqrt(v[None, :, None] + EPS)
                * g[None, :, None] + b[None, :, None])

    att = jax.nn.softmax(bn(z, p["gv"], p["bev"], p["mv"], p["vv"]), axis=2)
    cla = jax.nn.sigmoid(bn(z, p["gf"], p["bef"], p["mf"], p["vf"]))
    norm_att = att / jnp.sum(att, axis=1)[:, None, :]
    return jnp.sum(cla * norm_att, axis=1)


if __name__ == "__main__":
    B, T, H, K = 16, 8, 32, 32
    key = jax.random.PRNGKey(0)
    kh, kparams = jax.random.split(key)
    h = jax.random.normal(kh, (B, T, H), jnp.float32)
    params = init_params(kparams, H, K, T)

    y = jax.block_until_ready(attention_module(h, params))
    y_ref = reference(h, params)

    assert y.shape == (B, K)
    # bf16 matmul inputs (+ bf16 sigmoid branch on v6e/v7x) vs exact f32 ref.
    max_err = jnp.max(jnp.abs(y - y_ref))
    assert jnp.allclose(y, y_ref, atol=2e-2, rtol=2e-2), \
        f"max abs err {max_err}"
    print("KERNEL_OK")
</pallas_src>

<mosaic_0001>
module attributes {stable_mosaic.version = 11 : i64} {
  func.func @kernel(%arg0: i32, %arg1: memref<128x32xf32, #tpu.memory_space<vmem>>, %arg2: memref<32x128xbf16, #tpu.memory_space<vmem>>, %arg3: memref<64x3xf32, #tpu.memory_space<vmem>>, %arg4: memref<3x128xf32, #tpu.memory_space<vmem>>, %arg5: memref<16x128xf32, #tpu.memory_space<vmem>>, %arg6: memref<128x128xf32, #tpu.memory_space<vmem>>) attributes {dimension_semantics = [#tpu.dimension_semantics<parallel>], iteration_bounds = array<i64: 1>, scalar_prefetch = 0 : i64, scratch_operands = 1 : i64, tpu.core_type = #tpu.core_type<tc>, window_params = [{transform_indices = @transform_0, window_bounds = array<i64: 128, 32>}, {pipeline_mode = #tpu.pipeline_mode<synchronous>, transform_indices = @transform_1, window_bounds = array<i64: 32, 128>}, {pipeline_mode = #tpu.pipeline_mode<synchronous>, transform_indices = @transform_2, window_bounds = array<i64: 64, 3>}, {pipeline_mode = #tpu.pipeline_mode<synchronous>, transform_indices = @transform_3, window_bounds = array<i64: 3, 128>}, {transform_indices = @transform_4, window_bounds = array<i64: 16, 128>}]} {
    %c0 = arith.constant 0 : index
    %c0_0 = arith.constant 0 : index
    %0 = vector.load %arg1[%c0, %c0_0] : memref<128x32xf32, #tpu.memory_space<vmem>>, vector<128x32xf32>
    %1 = arith.truncf %0 : vector<128x32xf32> to vector<128x32xbf16>
    %c0_1 = arith.constant 0 : index
    %c0_2 = arith.constant 0 : index
    %2 = vector.load %arg2[%c0_1, %c0_2] : memref<32x128xbf16, #tpu.memory_space<vmem>>, vector<32x128xbf16>
    %cst = arith.constant dense<0.000000e+00> : vector<128x128xf32>
    %3 = tpu.matmul %1, %2, %cst {dimension_numbers = #tpu.dot_dimension_numbers<[1], [0], [0], [1], [0, 0, 1, 1], [], []>} : vector<128x32xbf16>, vector<32x128xbf16>, vector<128x128xf32> -> vector<128x128xf32>
    %c0_3 = arith.constant 0 : index
    %c0_4 = arith.constant 0 : index
    %4 = vector.load %arg4[%c0_3, %c0_4] : memref<3x128xf32, #tpu.memory_space<vmem>>, vector<1x128xf32>
    %5 = vector.broadcast %4 : vector<1x128xf32> to vector<128x128xf32>
    %6 = arith.addf %3, %5 : vector<128x128xf32>
    %c0_5 = arith.constant 0 : index
    %c0_6 = arith.constant 0 : index
    %7 = vector.load %arg6[%c0_5, %c0_6] : memref<128x128xf32, #tpu.memory_space<vmem>>, vector<128x128xf32>
    tpu.vector_store %arg6[%c0_5, %c0_6], %6 {strides = array<i32>} : memref<128x128xf32, #tpu.memory_space<vmem>>, vector<128x128xf32>,
    %c0_7 = arith.constant 0 : index
    %c0_8 = arith.constant 0 : index
    %8 = vector.load %arg3[%c0_7, %c0_8] : memref<64x3xf32, #tpu.memory_space<vmem>>, vector<64x1xf32>
    %c0_9 = arith.constant 0 : index
    %c1 = arith.constant 1 : index
    %9 = vector.load %arg3[%c0_9, %c1] : memref<64x3xf32, #tpu.memory_space<vmem>>, vector<64x1xf32>
    %c0_10 = arith.constant 0 : index
    %c2 = arith.constant 2 : index
    %10 = vector.load %arg3[%c0_10, %c2] : memref<64x3xf32, #tpu.memory_space<vmem>>, vector<64x1xf32>
    %c1_11 = arith.constant 1 : index
    %c0_12 = arith.constant 0 : index
    %11 = vector.load %arg4[%c1_11, %c0_12] : memref<3x128xf32, #tpu.memory_space<vmem>>, vector<1x128xf32>
    %c2_13 = arith.constant 2 : index
    %c0_14 = arith.constant 0 : index
    %12 = vector.load %arg4[%c2_13, %c0_14] : memref<3x128xf32, #tpu.memory_space<vmem>>, vector<1x128xf32>
    %c0_i32 = arith.constant 0 : i32
    %c64_i32 = arith.constant 64 : i32
    %13 = arith.muli %c0_i32, %c64_i32 : i32
    %14 = tpu.assume_multiple %13, 8 : i32
    %15 = arith.index_cast %14 : i32 to index
    %c0_15 = arith.constant 0 : index
    %16 = vector.load %arg6[%15, %c0_15] : memref<128x128xf32, #tpu.memory_space<vmem>>, vector<64x128xf32>
    %17 = vector.broadcast %8 : vector<64x1xf32> to vector<64x128xf32>
    %18 = arith.mulf %16, %17 : vector<64x128xf32>
    %19 = vector.broadcast %11 : vector<1x128xf32> to vector<64x128xf32>
    %20 = arith.addf %18, %19 : vector<64x128xf32>
    %21 = vector.broadcast %9 : vector<64x1xf32> to vector<64x128xf32>
    %22 = arith.mulf %16, %21 : vector<64x128xf32>
    %23 = vector.broadcast %10 : vector<64x1xf32> to vector<64x128xf32>
    %24 = arith.addf %22, %23 : vector<64x128xf32>
    %25 = arith.negf %24 : vector<64x128xf32>
    %26 = math.exp %25 : vector<64x128xf32>
    %cst_16 = arith.constant 1.000000e+00 : f32
    %27 = vector.broadcast %cst_16 : f32 to vector<64x128xf32>
    %28 = arith.addf %27, %26 : vector<64x128xf32>
    %29 = arith.divf %27, %28 : vector<64x128xf32>
    %cst_17 = arith.constant dense<0xFF800000> : vector<64xf32>
    %30 = vector.multi_reduction <maximumf>, %20, %cst_17 [1] : vector<64x128xf32> to vector<64xf32>
    %31 = vector.shape_cast %30 : vector<64xf32> to vector<64x1xf32>
    %32 = vector.broadcast %31 : vector<64x1xf32> to vector<64x128xf32>
    %33 = arith.subf %20, %32 : vector<64x128xf32>
    %34 = math.exp %33 : vector<64x128xf32>
    %cst_18 = arith.constant dense<0.000000e+00> : vector<64xf32>
    %35 = vector.multi_reduction <add>, %34, %cst_18 [1] : vector<64x128xf32> to vector<64xf32>
    %36 = vector.shape_cast %35 : vector<64xf32> to vector<64x1xf32>
    %37 = tpu.reciprocal %36 {approx = true} : vector<64x1xf32> -> vector<64x1xf32>
    %38 = vector.broadcast %37 : vector<64x1xf32> to vector<64x128xf32>
    %39 = arith.mulf %34, %38 : vector<64x128xf32>
    %40 = arith.mulf %29, %39 : vector<64x128xf32>
    %41 = vector.shape_cast %40 : vector<64x128xf32> to vector<8x8x128xf32>
    %cst_19 = arith.constant dense<0.000000e+00> : vector<8x128xf32>
    %42 = vector.multi_reduction <add>, %41, %cst_19 [1] : vector<8x8x128xf32> to vector<8x128xf32>
    %43 = vector.shape_cast %39 : vector<64x128xf32> to vector<8x8x128xf32>
    %cst_20 = arith.constant dense<0.000000e+00> : vector<8x128xf32>
    %44 = vector.multi_reduction <add>, %43, %cst_20 [1] : vector<8x8x128xf32> to vector<8x128xf32>
    %45 = vector.broadcast %12 : vector<1x128xf32> to vector<8x128xf32>
    %46 = arith.addf %44, %45 : vector<8x128xf32>
    %c8_i32 = arith.constant 8 : i32
    %47 = arith.muli %c0_i32, %c8_i32 : i32
    %48 = tpu.assume_multiple %47, 8 : i32
    %49 = arith.divf %42, %46 : vector<8x128xf32>
    %50 = arith.index_cast %48 : i32 to index
    %c0_21 = arith.constant 0 : index
    %51 = vector.load %arg5[%50, %c0_21] : memref<16x128xf32, #tpu.memory_space<vmem>>, vector<8x128xf32>
    tpu.vector_store %arg5[%50, %c0_21], %49 {strides = array<i32>} : memref<16x128xf32, #tpu.memory_space<vmem>>, vector<8x128xf32>,
    %c1_i32 = arith.constant 1 : i32
    %c64_i32_22 = arith.constant 64 : i32
    %52 = arith.muli %c1_i32, %c64_i32_22 : i32
    %53 = tpu.assume_multiple %52, 8 : i32
    %54 = arith.index_cast %53 : i32 to index
    %c0_23 = arith.constant 0 : index
    %55 = vector.load %arg6[%54, %c0_23] : memref<128x128xf32, #tpu.memory_space<vmem>>, vector<64x128xf32>
    %56 = vector.broadcast %8 : vector<64x1xf32> to vector<64x128xf32>
    %57 = arith.mulf %55, %56 : vector<64x128xf32>
    %58 = vector.broadcast %11 : vector<1x128xf32> to vector<64x128xf32>
    %59 = arith.addf %57, %58 : vector<64x128xf32>
    %60 = vector.broadcast %9 : vector<64x1xf32> to vector<64x128xf32>
    %61 = arith.mulf %55, %60 : vector<64x128xf32>
    %62 = vector.broadcast %10 : vector<64x1xf32> to vector<64x128xf32>
    %63 = arith.addf %61, %62 : vector<64x128xf32>
    %64 = arith.negf %63 : vector<64x128xf32>
    %65 = math.exp %64 : vector<64x128xf32>
    %cst_24 = arith.constant 1.000000e+00 : f32
    %66 = vector.broadcast %cst_24 : f32 to vector<64x128xf32>
    %67 = arith.addf %66, %65 : vector<64x128xf32>
    %68 = arith.divf %66, %67 : vector<64x128xf32>
    %cst_25 = arith.constant dense<0xFF800000> : vector<64xf32>
    %69 = vector.multi_reduction <maximumf>, %59, %cst_25 [1] : vector<64x128xf32> to vector<64xf32>
    %70 = vector.shape_cast %69 : vector<64xf32> to vector<64x1xf32>
    %71 = vector.broadcast %70 : vector<64x1xf32> to vector<64x128xf32>
    %72 = arith.subf %59, %71 : vector<64x128xf32>
    %73 = math.exp %72 : vector<64x128xf32>
    %cst_26 = arith.constant dense<0.000000e+00> : vector<64xf32>
    %74 = vector.multi_reduction <add>, %73, %cst_26 [1] : vector<64x128xf32> to vector<64xf32>
    %75 = vector.shape_cast %74 : vector<64xf32> to vector<64x1xf32>
    %76 = tpu.reciprocal %75 {approx = true} : vector<64x1xf32> -> vector<64x1xf32>
    %77 = vector.broadcast %76 : vector<64x1xf32> to vector<64x128xf32>
    %78 = arith.mulf %73, %77 : vector<64x128xf32>
    %79 = arith.mulf %68, %78 : vector<64x128xf32>
    %80 = vector.shape_cast %79 : vector<64x128xf32> to vector<8x8x128xf32>
    %cst_27 = arith.constant dense<0.000000e+00> : vector<8x128xf32>
    %81 = vector.multi_reduction <add>, %80, %cst_27 [1] : vector<8x8x128xf32> to vector<8x128xf32>
    %82 = vector.shape_cast %78 : vector<64x128xf32> to vector<8x8x128xf32>
    %cst_28 = arith.constant dense<0.000000e+00> : vector<8x128xf32>
    %83 = vector.multi_reduction <add>, %82, %cst_28 [1] : vector<8x8x128xf32> to vector<8x128xf32>
    %84 = vector.broadcast %12 : vector<1x128xf32> to vector<8x128xf32>
    %85 = arith.addf %83, %84 : vector<8x128xf32>
    %c8_i32_29 = arith.constant 8 : i32
    %86 = arith.muli %c1_i32, %c8_i32_29 : i32
    %87 = tpu.assume_multiple %86, 8 : i32
    %88 = arith.divf %81, %85 : vector<8x128xf32>
    %89 = arith.index_cast %87 : i32 to index
    %c0_30 = arith.constant 0 : index
    %90 = vector.load %arg5[%89, %c0_30] : memref<16x128xf32, #tpu.memory_space<vmem>>, vector<8x128xf32>
    tpu.vector_store %arg5[%89, %c0_30], %88 {strides = array<i32>} : memref<16x128xf32, #tpu.memory_space<vmem>>, vector<8x128xf32>,
    %c2_i32 = arith.constant 2 : i32
    return
  }
  func.func @transform_0(%arg0: i32) -> (i32, i32) {
    %c0_i32 = arith.constant 0 : i32
    %c0_i32_0 = arith.constant 0 : i32
    return %arg0, %c0_i32 : i32, i32
  }
  func.func @transform_1(%arg0: i32) -> (i32, i32) {
    %c0_i32 = arith.constant 0 : i32
    %c0_i32_0 = arith.constant 0 : i32
    %c0_i32_1 = arith.constant 0 : i32
    return %c0_i32, %c0_i32_0 : i32, i32
  }
  func.func @transform_2(%arg0: i32) -> (i32, i32) {
    %c0_i32 = arith.constant 0 : i32
    %c0_i32_0 = arith.constant 0 : i32
    %c0_i32_1 = arith.constant 0 : i32
    return %c0_i32, %c0_i32_0 : i32, i32
  }
  func.func @transform_3(%arg0: i32) -> (i32, i32) {
    %c0_i32 = arith.constant 0 : i32
    %c0_i32_0 = arith.constant 0 : i32
    %c0_i32_1 = arith.constant 0 : i32
    return %c0_i32, %c0_i32_0 : i32, i32
  }
  func.func @transform_4(%arg0: i32) -> (i32, i32) {
    %c0_i32 = arith.constant 0 : i32
    %c0_i32_0 = arith.constant 0 : i32
    return %arg0, %c0_i32 : i32, i32
  }
}

</mosaic_0001>

<llo_original>
// kernel: attention_module.1
$region0: #{attention_module.1}
  #allocation0 [shape = 'u32[]', space=smem, size = 0x4, offset = 0x4, fixed_abs, tag = 'smem constant byte address 0x4 - core index']
  #allocation1 [shape = 'u32[144,128]{1,0:T(1,128)}', space=vmem, size = 0x12000, scoped, tag = 'internal scratch']
  #allocation2 [shape = 'f32[128,128]{1,0:T(8,128)}', space=vmem, size = 0x10000, scoped, tag = 'scratch operand']
  %s0 = inlined_call_operand.vmem [shape: f32[128,32], index: 0, kind: input, shape index: {}]
  %s1 = inlined_call_operand.vmem [shape: bf16[32,128], index: 1, kind: input, shape index: {}]
  %s2 = inlined_call_operand.vmem [shape: f32[64,3], index: 2, kind: input, shape index: {}]
  %s3 = inlined_call_operand.vmem [shape: f32[3,128], index: 3, kind: input, shape index: {}]
  %s4 = inlined_call_operand.hbm [shape: f32[16,128], index: 4, kind: output, shape index: {}]
  %s5 = sld [smem:[#allocation0]]
  $region26: #{attention_module.1} parent=0
    _
  %s7 = ssub.s32 1, %s5
  %s8 = scalar_select 0, %s7, %s5
  $region1: #{attention_module.1} parent=0
    #allocation3 [shape = 'u8[8192]{0}', space=vmem, size = 0x2000, scoped, tag = 'output window, operand 0, single buffered']
    #allocation4 [shape = 's32[1]{0}', space=sflag, size = 0x4, scoped, tag = 'scoped memory for attention_module.1']
    %9 = vsyncpa [#allocation4], 0
    // Predicated region
    $region2: #{attention_module.1} parent=1 // pred_check
      _
    $region3: #{attention_module.1} parent=1 // pred_check_branch
      %11 = sbr.rel (0) target = $region5
    $region4: #{attention_module.1} parent=1 // pred_region
      _
    $region5: #{attention_module.1} parent=1 // pred_fallthru
      _
    // Predicated region
    $region6: #{attention_module.1} parent=1 // pred_check
      _
    $region7: #{attention_module.1} parent=1 // pred_check_branch
      %13 = sbr.rel (0) target = $region9
    $region8: #{attention_module.1} parent=1 // pred_region
      _
    $region9: #{attention_module.1} parent=1 // pred_fallthru
      _
    // Predicated region
    $region10: #{attention_module.1} parent=1 // pred_check
      _
    $region11: #{attention_module.1} parent=1 // pred_check_branch
      %15 = sbr.rel (0) target = $region13
    $region12: #{attention_module.1} parent=1 // pred_region
      _
    $region13: #{attention_module.1} parent=1 // pred_fallthru
      _
    // Predicated region
    $region14: #{attention_module.1} parent=1 // pred_check
      _
    $region15: #{attention_module.1} parent=1 // pred_check_branch
      %17 = sbr.rel (0) target = $region17
    $region16: #{attention_module.1} parent=1 // pred_region
      _
    $region17: #{attention_module.1} parent=1 // pred_fallthru
      _
    %v19 = vld [vmem:[%s0] sm:$0xff]
    %v20 = vld [vmem:[%s0 + $0x8] sm:$0xff]
    %v21 = vld [vmem:[%s0 + $0x10] sm:$0xff]
    %v22 = vld [vmem:[%s0 + $0x18] sm:$0xff]
    %v23 = vld [vmem:[%s0 + $0x20] sm:$0xff]
    %v24 = vld [vmem:[%s0 + $0x28] sm:$0xff]
    %v25 = vld [vmem:[%s0 + $0x30] sm:$0xff]
    %v26 = vld [vmem:[%s0 + $0x38] sm:$0xff]
    %v27 = vld [vmem:[%s0 + $0x40] sm:$0xff]
    %v28 = vld [vmem:[%s0 + $0x48] sm:$0xff]
    %v29 = vld [vmem:[%s0 + $0x50] sm:$0xff]
    %v30 = vld [vmem:[%s0 + $0x58] sm:$0xff]
    %v31 = vld [vmem:[%s0 + $0x60] sm:$0xff]
    %v32 = vld [vmem:[%s0 + $0x68] sm:$0xff]
    %v33 = vld [vmem:[%s0 + $0x70] sm:$0xff]
    %v34 = vld [vmem:[%s0 + $0x78] sm:$0xff]
    %v35 = vpack.c.bf16 %v20, %v19
    %v36 = vpack.c.bf16 %v22, %v21
    %v37 = vpack.c.bf16 %v24, %v23
    %v38 = vpack.c.bf16 %v26, %v25
    %v39 = vpack.c.bf16 %v28, %v27
    %v40 = vpack.c.bf16 %v30, %v29
    %v41 = vpack.c.bf16 %v32, %v31
    %v42 = vpack.c.bf16 %v34, %v33
    %v43 = vld [vmem:[%s1] sm:$0xf]
    %v44 = vld [vmem:[%s1 + $0x4] sm:$0xf]
    %v45 = vld [vmem:[%s1 + $0x8] sm:$0xf]
    %v46 = vld [vmem:[%s1 + $0xc] sm:$0xf]
    %v47 = vld [vmem:[%s3] sm:$0x1]
    %v48 = vlaneseq
    %v49 = vshrl.u32 %v48, 7
    %v50 = vsub.s32 0, %v49
    %v51 = vrot.slane %v47, %v50
    %v56 = vunpack.c.l.b16 %v43
    %v57 = vunpack.c.l.b16 %v44
    %v58 = vunpack.c.l.b16 %v45
    %v59 = vunpack.c.l.b16 %v46
    %v60 = vpack.c.b16 %v57, %v56
    %v61 = vpack.c.b16 %v59, %v58
    %vm64 = vcmask 261120
    %v66 = vsel %vm64, %v35, 0
    %v69 = vsel %vm64, %v36, 0
    %v72 = vsel %vm64, %v37, 0
    %v75 = vsel %vm64, %v38, 0
    %v78 = vsel %vm64, %v39, 0
    %v81 = vsel %vm64, %v40, 0
    %v84 = vsel %vm64, %v41, 0
    %v87 = vsel %vm64, %v42, 0
    %89 = vmatprep.subr.bf16.mxu0 0
    %90 = vmatpush1.bf16.msra.mxu0 %v60
    %91 = vmatprep.subr.bf16.mxu0 0
    %92 = vmatpush1.bf16.msra.mxu0 %v61
    %93 = vmatprep.subr.bf16.mxu0 0
    %94 = vmatpush1.bf16.msra.mxu0 0
    %95 = vmatprep.subr.bf16.mxu0 0
    %96 = vmatpush1.bf16.msra.mxu0 0
    %97 = vmatprep.subr.bf16.mxu0 0
    %98 = vmatpush1.bf16.msra.mxu0 0
    %99 = vmatprep.subr.bf16.mxu0 0
    %100 = vmatpush1.bf16.msra.mxu0 0
    %101 = vmatprep.subr.bf16.mxu0 0
    %102 = vmatpush1.bf16.msra.mxu0 0
    %103 = vmatprep.subr.bf16.mxu0 0
    %104 = vmatpush1.bf16.msra.mxu0 0
    %105 = vmatprep.subr.bf16.mxu0 0
    %106 = vmatpush1.bf16.msra.mxu0 0
    %107 = vmatprep.subr.bf16.mxu0 0
    %108 = vmatpush1.bf16.msra.mxu0 0
    %109 = vmatprep.subr.bf16.mxu0 0
    %110 = vmatpush1.bf16.msra.mxu0 0
    %111 = vmatprep.subr.bf16.mxu0 0
    %112 = vmatpush1.bf16.msra.mxu0 0
    %113 = vmatprep.subr.bf16.mxu0 0
    %114 = vmatpush1.bf16.msra.mxu0 0
    %115 = vmatprep.subr.bf16.mxu0 0
    %116 = vmatpush1.bf16.msra.mxu0 0
    %117 = vmatprep.subr.bf16.mxu0 0
    %118 = vmatpush1.bf16.msra.mxu0 0
    %119 = vmatprep.subr.bf16.mxu0 0
    %120 = vmatpush1.bf16.msra.mxu0 0
    %121 = vmatprep.mubr.bf16.mxu0 0
    %122 = vmatmul.mubr.bf16.gmra.mrb[0].mxu0 %v66
    %v123 = vpop.f32.mrb[0].mxu0
    %v124 = vadd.f32 %v51, %v123
    %v125 = vpop.f32.mrb[0].mxu0
    %v126 = vpop.f32.mrb[0].mxu0
    %v127 = vadd.f32 %v51, %v126
    %v128 = vpop.f32.mrb[0].mxu0
    %129 = vmatprep.mubr.bf16.mxu0 0
    %130 = vmatmul.mubr.bf16.gmra.mrb[0].mxu0 %v69
    %v131 = vpop.f32.mrb[0].mxu0
    %v132 = vadd.f32 %v51, %v131
    %v133 = vpop.f32.mrb[0].mxu0
    %v134 = vpop.f32.mrb[0].mxu0
    %v135 = vadd.f32 %v51, %v134
    %v136 = vpop.f32.mrb[0].mxu0
    %137 = vmatprep.mubr.bf16.mxu0 0
    %138 = vmatmul.mubr.bf16.gmra.mrb[0].mxu0 %v72
    %v139 = vpop.f32.mrb[0].mxu0
    %v140 = vadd.f32 %v51, %v139
    %v141 = vpop.f32.mrb[0].mxu0
    %v142 = vpop.f32.mrb[0].mxu0
    %v143 = vadd.f32 %v51, %v142
    %v144 = vpop.f32.mrb[0].mxu0
    %145 = vmatprep.mubr.bf16.mxu0 0
    %146 = vmatmul.mubr.bf16.gmra.mrb[0].mxu0 %v75
    %v147 = vpop.f32.mrb[0].mxu0
    %v148 = vadd.f32 %v51, %v147
    %v149 = vpop.f32.mrb[0].mxu0
    %v150 = vpop.f32.mrb[0].mxu0
    %v151 = vadd.f32 %v51, %v150
    %v152 = vpop.f32.mrb[0].mxu0
    %153 = vmatprep.mubr.bf16.mxu0 0
    %154 = vmatmul.mubr.bf16.gmra.mrb[0].mxu0 %v78
    %v155 = vpop.f32.mrb[0].mxu0
    %v156 = vadd.f32 %v51, %v155
    %v157 = vpop.f32.mrb[0].mxu0
    %v158 = vpop.f32.mrb[0].mxu0
    %v159 = vadd.f32 %v51, %v158
    %v160 = vpop.f32.mrb[0].mxu0
    %161 = vmatprep.mubr.bf16.mxu0 0
    %162 = vmatmul.mubr.bf16.gmra.mrb[0].mxu0 %v81
    %v163 = vpop.f32.mrb[0].mxu0
    %v164 = vadd.f32 %v51, %v163
    %v165 = vpop.f32.mrb[0].mxu0
    %v166 = vpop.f32.mrb[0].mxu0
    %v167 = vadd.f32 %v51, %v166
    %v168 = vpop.f32.mrb[0].mxu0
    %169 = vmatprep.mubr.bf16.mxu0 0
    %170 = vmatmul.mubr.bf16.gmra.mrb[0].mxu0 %v84
    %v171 = vpop.f32.mrb[0].mxu0
    %v172 = vadd.f32 %v51, %v171
    %v173 = vpop.f32.mrb[0].mxu0
    %v174 = vpop.f32.mrb[0].mxu0
    %v175 = vadd.f32 %v51, %v174
    %v176 = vpop.f32.mrb[0].mxu0
    %177 = vmatprep.mubr.bf16.mxu0 0
    %178 = vmatmul.mubr.bf16.gmra.mrb[0].mxu0 %v87
    %v179 = vpop.f32.mrb[0].mxu0
    %v180 = vadd.f32 %v51, %v179
    %v181 = vpop.f32.mrb[0].mxu0
    %v182 = vpop.f32.mrb[0].mxu0
    %v183 = vadd.f32 %v51, %v182
    %v184 = vpop.f32.mrb[0].mxu0
    %185 = vdwg.mxu0
    %186 = vst [vmem:[#allocation2] sm:$0xff] %v124
    %187 = vst [vmem:[#allocation2 + $0x8] sm:$0xff] %v127
    %188 = vst [vmem:[#allocation2 + $0x10] sm:$0xff] %v132
    %189 = vst [vmem:[#allocation2 + $0x18] sm:$0xff] %v135
    %190 = vst [vmem:[#allocation2 + $0x20] sm:$0xff] %v140
    %191 = vst [vmem:[#allocation2 + $0x28] sm:$0xff] %v143
    %192 = vst [vmem:[#allocation2 + $0x30] sm:$0xff] %v148
    %193 = vst [vmem:[#allocation2 + $0x38] sm:$0xff] %v151
    %194 = vst [vmem:[#allocation2 + $0x40] sm:$0xff] %v156
    %195 = vst [vmem:[#allocation2 + $0x48] sm:$0xff] %v159
    %196 = vst [vmem:[#allocation2 + $0x50] sm:$0xff] %v164
    %197 = vst [vmem:[#allocation2 + $0x58] sm:$0xff] %v167
    %198 = vst [vmem:[#allocation2 + $0x60] sm:$0xff] %v172
    %199 = vst [vmem:[#allocation2 + $0x68] sm:$0xff] %v175
    %200 = vst [vmem:[#allocation2 + $0x70] sm:$0xff] %v180
    %201 = vst [vmem:[#allocation2 + $0x78] sm:$0xff] %v183
    %v202 = vld [vmem:[%s2] sm:$0xff]
    %v203 = vld [vmem:[%s2 + $0x8] sm:$0xff]
    %v204 = vld [vmem:[%s2 + $0x10] sm:$0xff]
    %v205 = vld [vmem:[%s2 + $0x18] sm:$0xff]
    %v206 = vld [vmem:[%s2 + $0x20] sm:$0xff]
    %v207 = vld [vmem:[%s2 + $0x28] sm:$0xff]
    %v208 = vld [vmem:[%s2 + $0x30] sm:$0xff]
    %v209 = vld [vmem:[%s2 + $0x38] sm:$0xff]
    %v210 = vld [vmem:[%s3 + $0x1] sm:$0x1]
    %v211 = vld [vmem:[%s3 + $0x2] sm:$0x1]
    %v212 = vld [vmem:[#allocation2] sm:$0xff]
    %v213 = vld [vmem:[#allocation2 + $0x8] sm:$0xff]
    %v214 = vld [vmem:[#allocation2 + $0x10] sm:$0xff]
    %v215 = vld [vmem:[#allocation2 + $0x18] sm:$0xff]
    %v216 = vld [vmem:[#allocation2 + $0x20] sm:$0xff]
    %v217 = vld [vmem:[#allocation2 + $0x28] sm:$0xff]
    %v218 = vld [vmem:[#allocation2 + $0x30] sm:$0xff]
    %v219 = vld [vmem:[#allocation2 + $0x38] sm:$0xff]
    %221 = vset.pattern.permute.xlu0 0
    %222 = vperm.xlu0 %221, %v202
    %v223 = vpop.permute.xlu0 %222
    %226 = vset.pattern.permute.xlu0 0
    %227 = vperm.xlu0 %226, %v203
    %v228 = vpop.permute.xlu0 %227
    %231 = vset.pattern.permute.xlu0 0
    %232 = vperm.xlu0 %231, %v204
    %v233 = vpop.permute.xlu0 %232
    %236 = vset.pattern.permute.xlu0 0
    %237 = vperm.xlu0 %236, %v205
    %v238 = vpop.permute.xlu0 %237
    %241 = vset.pattern.permute.xlu0 0
    %242 = vperm.xlu0 %241, %v206
    %v243 = vpop.permute.xlu0 %242
    %246 = vset.pattern.permute.xlu0 0
    %247 = vperm.xlu0 %246, %v207
    %v248 = vpop.permute.xlu0 %247
    %251 = vset.pattern.permute.xlu0 0
    %252 = vperm.xlu0 %251, %v208
    %v253 = vpop.permute.xlu0 %252
    %256 = vset.pattern.permute.xlu0 0
    %257 = vperm.xlu0 %256, %v209
    %v258 = vpop.permute.xlu0 %257
    %v260 = vmul.f32 %v212, %v223
    %v261 = vmul.f32 %v213, %v228
    %v262 = vmul.f32 %v214, %v233
    %v263 = vmul.f32 %v215, %v238
    %v264 = vmul.f32 %v216, %v243
    %v265 = vmul.f32 %v217, %v248
    %v266 = vmul.f32 %v218, %v253
    %v267 = vmul.f32 %v219, %v258
    %v268 = vlaneseq
    %v269 = vshrl.u32 %v268, 7
    %v270 = vsub.s32 0, %v269
    %v271 = vrot.slane %v210, %v270
    %v272 = vadd.f32 %v260, %v271
    %v273 = vadd.f32 %v261, %v271
    %v274 = vadd.f32 %v262, %v271
    %v275 = vadd.f32 %v263, %v271
    %v276 = vadd.f32 %v264, %v271
    %v277 = vadd.f32 %v265, %v271
    %v278 = vadd.f32 %v266, %v271
    %v279 = vadd.f32 %v267, %v271
    %280 = vset.pattern.permute.xlu0 1
    %281 = vperm.xlu0 %280, %v202
    %v282 = vpop.permute.xlu0 %281
    %284 = vset.pattern.permute.xlu0 1
    %285 = vperm.xlu0 %284, %v203
    %v286 = vpop.permute.xlu0 %285
    %288 = vset.pattern.permute.xlu0 1
    %289 = vperm.xlu0 %288, %v204
    %v290 = vpop.permute.xlu0 %289
    %292 = vset.pattern.permute.xlu0 1
    %293 = vperm.xlu0 %292, %v205
    %v294 = vpop.permute.xlu0 %293
    %296 = vset.pattern.permute.xlu0 1
    %297 = vperm.xlu0 %296, %v206
    %v298 = vpop.permute.xlu0 %297
    %300 = vset.pattern.permute.xlu0 1
    %301 = vperm.xlu0 %300, %v207
    %v302 = vpop.permute.xlu0 %301
    %304 = vset.pattern.permute.xlu0 1
    %305 = vperm.xlu0 %304, %v208
    %v306 = vpop.permute.xlu0 %305
    %308 = vset.pattern.permute.xlu0 1
    %309 = vperm.xlu0 %308, %v209
    %v310 = vpop.permute.xlu0 %309
    %v312 = vmul.f32 %v212, %v282
    %v313 = vmul.f32 %v213, %v286
    %v314 = vmul.f32 %v214, %v290
    %v315 = vmul.f32 %v215, %v294
    %v316 = vmul.f32 %v216, %v298
    %v317 = vmul.f32 %v217, %v302
    %v318 = vmul.f32 %v218, %v306
    %v319 = vmul.f32 %v219, %v310
    %320 = vset.pattern.permute.xlu0 2
    %321 = vperm.xlu0 %320, %v202
    %v322 = vpop.permute.xlu0 %321
    %324 = vset.pattern.permute.xlu0 2
    %325 = vperm.xlu0 %324, %v203
    %v326 = vpop.permute.xlu0 %325
    %328 = vset.pattern.permute.xlu0 2
    %329 = vperm.xlu0 %328, %v204
    %v330 = vpop.permute.xlu0 %329
    %332 = vset.pattern.permute.xlu0 2
    %333 = vperm.xlu0 %332, %v205
    %v334 = vpop.permute.xlu0 %333
    %336 = vset.pattern.permute.xlu0 2
    %337 = vperm.xlu0 %336, %v206
    %v338 = vpop.permute.xlu0 %337
    %340 = vset.pattern.permute.xlu0 2
    %341 = vperm.xlu0 %340, %v207
    %v342 = vpop.permute.xlu0 %341
    %344 = vset.pattern.permute.xlu0 2
    %345 = vperm.xlu0 %344, %v208
    %v346 = vpop.permute.xlu0 %345
    %348 = vset.pattern.permute.xlu0 2
    %349 = vperm.xlu0 %348, %v209
    %v350 = vpop.permute.xlu0 %349
    %v352 = vadd.f32 %v312, %v322
    %v353 = vadd.f32 %v313, %v326
    %v354 = vadd.f32 %v314, %v330
    %v355 = vadd.f32 %v315, %v334
    %v356 = vadd.f32 %v316, %v338
    %v357 = vadd.f32 %v317, %v342
    %v358 = vadd.f32 %v318, %v346
    %v359 = vadd.f32 %v319, %v350
    %v360 = vxor.u32 %v352, 2147483648
    %v361 = vxor.u32 %v353, 2147483648
    %v362 = vxor.u32 %v354, 2147483648
    %v363 = vxor.u32 %v355, 2147483648
    %v364 = vxor.u32 %v356, 2147483648
    %v365 = vxor.u32 %v357, 2147483648
    %v366 = vxor.u32 %v358, 2147483648
    %v367 = vxor.u32 %v359, 2147483648
    %v368 = vmul.f32 %v360, 1.442695
    %v369 = vpow.pop %v368
    %v370 = vmul.f32 %v361, 1.442695
    %v371 = vpow.pop %v370
    %v372 = vmul.f32 %v362, 1.442695
    %v373 = vpow.pop %v372
    %v374 = vmul.f32 %v363, 1.442695
    %v375 = vpow.pop %v374
    %v376 = vmul.f32 %v364, 1.442695
    %v377 = vpow.pop %v376
    %v378 = vmul.f32 %v365, 1.442695
    %v379 = vpow.pop %v378
    %v380 = vmul.f32 %v366, 1.442695
    %v381 = vpow.pop %v380
    %v382 = vmul.f32 %v367, 1.442695
    %v383 = vpow.pop %v382
    %v384 = vadd.f32 %v369, 1.0
    %v385 = vadd.f32 %v371, 1.0
    %v386 = vadd.f32 %v373, 1.0
    %v387 = vadd.f32 %v375, 1.0
    %v388 = vadd.f32 %v377, 1.0
    %v389 = vadd.f32 %v379, 1.0
    %v390 = vadd.f32 %v381, 1.0
    %v391 = vadd.f32 %v383, 1.0
    %v392 = vrcp.pop %v384
    %v393 = vmul.f32 1.0, %v392
    %v394 = vrcp.pop %v385
    %v395 = vmul.f32 1.0, %v394
    %v396 = vrcp.pop %v386
    %v397 = vmul.f32 1.0, %v396
    %v398 = vrcp.pop %v387
    %v399 = vmul.f32 1.0, %v398
    %v400 = vrcp.pop %v388
    %v401 = vmul.f32 1.0, %v400
    %v402 = vrcp.pop %v389
    %v403 = vmul.f32 1.0, %v402
    %v404 = vrcp.pop %v390
    %v405 = vmul.f32 1.0, %v404
    %v406 = vrcp.pop %v391
    %v407 = vmul.f32 1.0, %v406
    %408 = vmax.xlane.f32.xlu0 %v272
    %v409 = vpop.xlane.xlu0 %408
    %410 = vmax.xlane.f32.xlu0 %v273
    %v411 = vpop.xlane.xlu0 %410
    %412 = vmax.xlane.f32.xlu0 %v274
    %v413 = vpop.xlane.xlu0 %412
    %414 = vmax.xlane.f32.xlu0 %v275
    %v415 = vpop.xlane.xlu0 %414
    %416 = vmax.xlane.f32.xlu0 %v276
    %v417 = vpop.xlane.xlu0 %416
    %418 = vmax.xlane.f32.xlu0 %v277
    %v419 = vpop.xlane.xlu0 %418
    %420 = vmax.xlane.f32.xlu0 %v278
    %v421 = vpop.xlane.xlu0 %420
    %422 = vmax.xlane.f32.xlu0 %v279
    %v423 = vpop.xlane.xlu0 %422
    %v424 = vsub.f32 %v272, %v409
    %v425 = vsub.f32 %v273, %v411
    %v426 = vsub.f32 %v274, %v413
    %v427 = vsub.f32 %v275, %v415
    %v428 = vsub.f32 %v276, %v417
    %v429 = vsub.f32 %v277, %v419
    %v430 = vsub.f32 %v278, %v421
    %v431 = vsub.f32 %v279, %v423
    %v432 = vmul.f32 %v424, 1.442695
    %v433 = vpow.pop %v432
    %v434 = vmul.f32 %v425, 1.442695
    %v435 = vpow.pop %v434
    %v436 = vmul.f32 %v426, 1.442695
    %v437 = vpow.pop %v436
    %v438 = vmul.f32 %v427, 1.442695
    %v439 = vpow.pop %v438
    %v440 = vmul.f32 %v428, 1.442695
    %v441 = vpow.pop %v440
    %v442 = vmul.f32 %v429, 1.442695
    %v443 = vpow.pop %v442
    %v444 = vmul.f32 %v430, 1.442695
    %v445 = vpow.pop %v444
    %v446 = vmul.f32 %v431, 1.442695
    %v447 = vpow.pop %v446
    %448 = vadd.xlane.f32.xlu0 %v433
    %v449 = vpop.xlane.xlu0 %448
    %450 = vadd.xlane.f32.xlu0 %v435
    %v451 = vpop.xlane.xlu0 %450
    %452 = vadd.xlane.f32.xlu0 %v437
    %v453 = vpop.xlane.xlu0 %452
    %454 = vadd.xlane.f32.xlu0 %v439
    %v455 = vpop.xlane.xlu0 %454
    %456 = vadd.xlane.f32.xlu0 %v441
    %v457 = vpop.xlane.xlu0 %456
    %458 = vadd.xlane.f32.xlu0 %v443
    %v459 = vpop.xlane.xlu0 %458
    %460 = vadd.xlane.f32.xlu0 %v445
    %v461 = vpop.xlane.xlu0 %460
    %462 = vadd.xlane.f32.xlu0 %v447
    %v463 = vpop.xlane.xlu0 %462
    %v464 = vrcp.pop %v449
    %v465 = vrcp.pop %v451
    %v466 = vrcp.pop %v453
    %v467 = vrcp.pop %v455
    %v468 = vrcp.pop %v457
    %v469 = vrcp.pop %v459
    %v470 = vrcp.pop %v461
    %v471 = vrcp.pop %v463
    %v472 = vmul.f32 %v433, %v464
    %v473 = vmul.f32 %v435, %v465
    %v474 = vmul.f32 %v437, %v466
    %v475 = vmul.f32 %v439, %v467
    %v476 = vmul.f32 %v441, %v468
    %v477 = vmul.f32 %v443, %v469
    %v478 = vmul.f32 %v445, %v470
    %v479 = vmul.f32 %v447, %v471
    %v480 = vmul.f32 %v393, %v472
    %v481 = vmul.f32 %v395, %v473
    %v482 = vmul.f32 %v397, %v474
    %v483 = vmul.f32 %v399, %v475
    %v484 = vmul.f32 %v401, %v476
    %v485 = vmul.f32 %v403, %v477
    %v486 = vmul.f32 %v405, %v478
    %v487 = vmul.f32 %v407, %v479
    %v488 = vrot.slane %v480, 4
    %v489 = vadd.f32 %v480, %v488
    %v490 = vrot.slane %v489, 2
    %v491 = vadd.f32 %v489, %v490
    %v492 = vrot.slane %v491, 1
    %v493 = vadd.f32 %v491, %v492
    %v494 = vrot.slane %v481, 4
    %v495 = vadd.f32 %v481, %v494
    %v496 = vrot.slane %v495, 2
    %v497 = vadd.f32 %v495, %v496
    %v498 = vrot.slane %v497, 1
    %v499 = vadd.f32 %v497, %v498
    %v500 = vrot.slane %v482, 4
    %v501 = vadd.f32 %v482, %v500
    %v502 = vrot.slane %v501, 2
    %v503 = vadd.f32 %v501, %v502
    %v504 = vrot.slane %v503, 1
    %v505 = vadd.f32 %v503, %v504
    %v506 = vrot.slane %v483, 4
    %v507 = vadd.f32 %v483, %v506
    %v508 = vrot.slane %v507, 2
    %v509 = vadd.f32 %v507, %v508
    %v510 = vrot.slane %v509, 1
    %v511 = vadd.f32 %v509, %v510
    %v512 = vrot.slane %v484, 4
    %v513 = vadd.f32 %v484, %v512
    %v514 = vrot.slane %v513, 2
    %v515 = vadd.f32 %v513, %v514
    %v516 = vrot.slane %v515, 1
    %v517 = vadd.f32 %v515, %v516
    %v518 = vrot.slane %v485, 4
    %v519 = vadd.f32 %v485, %v518
    %v520 = vrot.slane %v519, 2
    %v521 = vadd.f32 %v519, %v520
    %v522 = vrot.slane %v521, 1
    %v523 = vadd.f32 %v521, %v522
    %v524 = vrot.slane %v486, 4
    %v525 = vadd.f32 %v486, %v524
    %v526 = vrot.slane %v525, 2
    %v527 = vadd.f32 %v525, %v526
    %v528 = vrot.slane %v527, 1
    %v529 = vadd.f32 %v527, %v528
    %v530 = vrot.slane %v487, 4
    %v531 = vadd.f32 %v487, %v530
    %v532 = vrot.slane %v531, 2
    %v533 = vadd.f32 %v531, %v532
    %v534 = vrot.slane %v533, 1
    %v535 = vadd.f32 %v533, %v534
    %v536 = vrot.slane %v472, 4
    %v537 = vadd.f32 %v472, %v536
    %v538 = vrot.slane %v537, 2
    %v539 = vadd.f32 %v537, %v538
    %v540 = vrot.slane %v539, 1
    %v541 = vadd.f32 %v539, %v540
    %v542 = vrot.slane %v473, 4
    %v543 = vadd.f32 %v473, %v542
    %v544 = vrot.slane %v543, 2
    %v545 = vadd.f32 %v543, %v544
    %v546 = vrot.slane %v545, 1
    %v547 = vadd.f32 %v545, %v546
    %v548 = vrot.slane %v474, 4
    %v549 = vadd.f32 %v474, %v548
    %v550 = vrot.slane %v549, 2
    %v551 = vadd.f32 %v549, %v550
    %v552 = vrot.slane %v551, 1
    %v553 = vadd.f32 %v551, %v552
    %v554 = vrot.slane %v475, 4
    %v555 = vadd.f32 %v475, %v554
    %v556 = vrot.slane %v555, 2
    %v557 = vadd.f32 %v555, %v556
    %v558 = vrot.slane %v557, 1
    %v559 = vadd.f32 %v557, %v558
    %v560 = vrot.slane %v476, 4
    %v561 = vadd.f32 %v476, %v560
    %v562 = vrot.slane %v561, 2
    %v563 = vadd.f32 %v561, %v562
    %v564 = vrot.slane %v563, 1
    %v565 = vadd.f32 %v563, %v564
    %v566 = vrot.slane %v477, 4
    %v567 = vadd.f32 %v477, %v566
    %v568 = vrot.slane %v567, 2
    %v569 = vadd.f32 %v567, %v568
    %v570 = vrot.slane %v569, 1
    %v571 = vadd.f32 %v569, %v570
    %v572 = vrot.slane %v478, 4
    %v573 = vadd.f32 %v478, %v572
    %v574 = vrot.slane %v573, 2
    %v575 = vadd.f32 %v573, %v574
    %v576 = vrot.slane %v575, 1
    %v577 = vadd.f32 %v575, %v576
    %v578 = vrot.slane %v479, 4
    %v579 = vadd.f32 %v479, %v578
    %v580 = vrot.slane %v579, 2
    %v581 = vadd.f32 %v579, %v580
    %v582 = vrot.slane %v581, 1
    %v583 = vadd.f32 %v581, %v582
    %v584 = vlaneseq
    %v585 = vshrl.u32 %v584, 7
    %v586 = vsub.s32 0, %v585
    %v587 = vrot.slane %v211, %v586
    %v588 = vadd.f32 %v541, %v587
    %v589 = vadd.f32 %v547, %v587
    %v590 = vadd.f32 %v553, %v587
    %v591 = vadd.f32 %v559, %v587
    %v592 = vadd.f32 %v565, %v587
    %v593 = vadd.f32 %v571, %v587
    %v594 = vadd.f32 %v577, %v587
    %v595 = vadd.f32 %v583, %v587
    %v596 = vrcp.pop %v588
    %v597 = vmul.f32 %v493, %v596
    %v598 = vrcp.pop %v589
    %v599 = vmul.f32 %v499, %v598
    %v600 = vrcp.pop %v590
    %v601 = vmul.f32 %v505, %v600
    %v602 = vrcp.pop %v591
    %v603 = vmul.f32 %v511, %v602
    %v604 = vrcp.pop %v592
    %v605 = vmul.f32 %v517, %v604
    %v606 = vrcp.pop %v593
    %v607 = vmul.f32 %v523, %v606
    %v608 = vrcp.pop %v594
    %v609 = vmul.f32 %v529, %v608
    %v610 = vrcp.pop %v595
    %v611 = vmul.f32 %v535, %v610
    %v620 = vrot.slane %v599, 7
    %vm621 = vcmask 1041409
    %v622 = vsel %vm621, %v620, %v597
    %v623 = vrot.slane %v601, 6
    %vm624 = vcmask 1042434
    %v625 = vsel %vm624, %v623, %v622
    %v626 = vrot.slane %v603, 5
    %vm627 = vcmask 1043459
    %v628 = vsel %vm627, %v626, %v625
    %v629 = vrot.slane %v605, 4
    %vm630 = vcmask 1044484
    %v631 = vsel %vm630, %v629, %v628
    %v632 = vrot.slane %v607, 3
    %vm633 = vcmask 1045509
    %v634 = vsel %vm633, %v632, %v631
    %v635 = vrot.slane %v609, 2
    %vm636 = vcmask 1046534
    %v637 = vsel %vm636, %v635, %v634
    %v638 = vrot.slane %v611, 1
    %vm639 = vcmask 1047559
    %v640 = vsel %vm639, %v638, %v637
    %642 = vst [vmem:[#allocation3] sm:$0xff] %v640
    %s643 = scalar_lea.vmem [#allocation2], 64
    %v644 = vld [vmem:[%s643] sm:$0xff]
    %v645 = vld [vmem:[%s643 + $0x8] sm:$0xff]
    %v646 = vld [vmem:[%s643 + $0x10] sm:$0xff]
    %v647 = vld [vmem:[%s643 + $0x18] sm:$0xff]
    %v648 = vld [vmem:[%s643 + $0x20] sm:$0xff]
    %v649 = vld [vmem:[%s643 + $0x28] sm:$0xff]
    %v650 = vld [vmem:[%s643 + $0x30] sm:$0xff]
    %v651 = vld [vmem:[%s643 + $0x38] sm:$0xff]
    %v652 = vmul.f32 %v644, %v223
    %v653 = vmul.f32 %v645, %v228
    %v654 = vmul.f32 %v646, %v233
    %v655 = vmul.f32 %v647, %v238
    %v656 = vmul.f32 %v648, %v243
    %v657 = vmul.f32 %v649, %v248
    %v658 = vmul.f32 %v650, %v253
    %v659 = vmul.f32 %v651, %v258
    %v660 = vadd.f32 %v652, %v271
    %v661 = vadd.f32 %v653, %v271
    %v662 = vadd.f32 %v654, %v271
    %v663 = vadd.f32 %v655, %v271
    %v664 = vadd.f32 %v656, %v271
    %v665 = vadd.f32 %v657, %v271
    %v666 = vadd.f32 %v658, %v271
    %v667 = vadd.f32 %v659, %v271
    %v668 = vmul.f32 %v644, %v282
    %v669 = vmul.f32 %v645, %v286
    %v670 = vmul.f32 %v646, %v290
    %v671 = vmul.f32 %v647, %v294
    %v672 = vmul.f32 %v648, %v298
    %v673 = vmul.f32 %v649, %v302
    %v674 = vmul.f32 %v650, %v306
    %v675 = vmul.f32 %v651, %v310
    %v676 = vadd.f32 %v668, %v322
    %v677 = vadd.f32 %v669, %v326
    %v678 = vadd.f32 %v670, %v330
    %v679 = vadd.f32 %v671, %v334
    %v680 = vadd.f32 %v672, %v338
    %v681 = vadd.f32 %v673, %v342
    %v682 = vadd.f32 %v674, %v346
    %v683 = vadd.f32 %v675, %v350
    %v684 = vxor.u32 %v676, 2147483648
    %v685 = vxor.u32 %v677, 2147483648
    %v686 = vxor.u32 %v678, 2147483648
    %v687 = vxor.u32 %v679, 2147483648
    %v688 = vxor.u32 %v680, 2147483648
    %v689 = vxor.u32 %v681, 2147483648
    %v690 = vxor.u32 %v682, 2147483648
    %v691 = vxor.u32 %v683, 2147483648
    %v692 = vmul.f32 %v684, 1.442695
    %v693 = vpow.pop %v692
    %v694 = vmul.f32 %v685, 1.442695
    %v695 = vpow.pop %v694
    %v696 = vmul.f32 %v686, 1.442695
    %v697 = vpow.pop %v696
    %v698 = vmul.f32 %v687, 1.442695
    %v699 = vpow.pop %v698
    %v700 = vmul.f32 %v688, 1.442695
    %v701 = vpow.pop %v700
    %v702 = vmul.f32 %v689, 1.442695
    %v703 = vpow.pop %v702
    %v704 = vmul.f32 %v690, 1.442695
    %v705 = vpow.pop %v704
    %v706 = vmul.f32 %v691, 1.442695
    %v707 = vpow.pop %v706
    %v708 = vadd.f32 %v693, 1.0
    %v709 = vadd.f32 %v695, 1.0
    %v710 = vadd.f32 %v697, 1.0
    %v711 = vadd.f32 %v699, 1.0
    %v712 = vadd.f32 %v701, 1.0
    %v713 = vadd.f32 %v703, 1.0
    %v714 = vadd.f32 %v705, 1.0
    %v715 = vadd.f32 %v707, 1.0
    %v716 = vrcp.pop %v708
    %v717 = vmul.f32 1.0, %v716
    %v718 = vrcp.pop %v709
    %v719 = vmul.f32 1.0, %v718
    %v720 = vrcp.pop %v710
    %v721 = vmul.f32 1.0, %v720
    %v722 = vrcp.pop %v711
    %v723 = vmul.f32 1.0, %v722
    %v724 = vrcp.pop %v712
    %v725 = vmul.f32 1.0, %v724
    %v726 = vrcp.pop %v713
    %v727 = vmul.f32 1.0, %v726
    %v728 = vrcp.pop %v714
    %v729 = vmul.f32 1.0, %v728
    %v730 = vrcp.pop %v715
    %v731 = vmul.f32 1.0, %v730
    %732 = vmax.xlane.f32.xlu0 %v660
    %v733 = vpop.xlane.xlu0 %732
    %734 = vmax.xlane.f32.xlu0 %v661
    %v735 = vpop.xlane.xlu0 %734
    %736 = vmax.xlane.f32.xlu0 %v662
    %v737 = vpop.xlane.xlu0 %736
    %738 = vmax.xlane.f32.xlu0 %v663
    %v739 = vpop.xlane.xlu0 %738
    %740 = vmax.xlane.f32.xlu0 %v664
    %v741 = vpop.xlane.xlu0 %740
    %742 = vmax.xlane.f32.xlu0 %v665
    %v743 = vpop.xlane.xlu0 %742
    %744 = vmax.xlane.f32.xlu0 %v666
    %v745 = vpop.xlane.xlu0 %744
    %746 = vmax.xlane.f32.xlu0 %v667
    %v747 = vpop.xlane.xlu0 %746
    %v748 = vsub.f32 %v660, %v733
    %v749 = vsub.f32 %v661, %v735
    %v750 = vsub.f32 %v662, %v737
    %v751 = vsub.f32 %v663, %v739
    %v752 = vsub.f32 %v664, %v741
    %v753 = vsub.f32 %v665, %v743
    %v754 = vsub.f32 %v666, %v745
    %v755 = vsub.f32 %v667, %v747
    %v756 = vmul.f32 %v748, 1.442695
    %v757 = vpow.pop %v756
    %v758 = vmul.f32 %v749, 1.442695
    %v759 = vpow.pop %v758
    %v760 = vmul.f32 %v750, 1.442695
    %v761 = vpow.pop %v760
    %v762 = vmul.f32 %v751, 1.442695
    %v763 = vpow.pop %v762
    %v764 = vmul.f32 %v752, 1.442695
    %v765 = vpow.pop %v764
    %v766 = vmul.f32 %v753, 1.442695
    %v767 = vpow.pop %v766
    %v768 = vmul.f32 %v754, 1.442695
    %v769 = vpow.pop %v768
    %v770 = vmul.f32 %v755, 1.442695
    %v771 = vpow.pop %v770
    %772 = vadd.xlane.f32.xlu0 %v757
    %v773 = vpop.xlane.xlu0 %772
    %774 = vadd.xlane.f32.xlu0 %v759
    %v775 = vpop.xlane.xlu0 %774
    %776 = vadd.xlane.f32.xlu0 %v761
    %v777 = vpop.xlane.xlu0 %776
    %778 = vadd.xlane.f32.xlu0 %v763
    %v779 = vpop.xlane.xlu0 %778
    %780 = vadd.xlane.f32.xlu0 %v765
    %v781 = vpop.xlane.xlu0 %780
    %782 = vadd.xlane.f32.xlu0 %v767
    %v783 = vpop.xlane.xlu0 %782
    %784 = vadd.xlane.f32.xlu0 %v769
    %v785 = vpop.xlane.xlu0 %784
    %786 = vadd.xlane.f32.xlu0 %v771
    %v787 = vpop.xlane.xlu0 %786
    %v788 = vrcp.pop %v773
    %v789 = vrcp.pop %v775
    %v790 = vrcp.pop %v777
    %v791 = vrcp.pop %v779
    %v792 = vrcp.pop %v781
    %v793 = vrcp.pop %v783
    %v794 = vrcp.pop %v785
    %v795 = vrcp.pop %v787
    %v796 = vmul.f32 %v757, %v788
    %v797 = vmul.f32 %v759, %v789
    %v798 = vmul.f32 %v761, %v790
    %v799 = vmul.f32 %v763, %v791
    %v800 = vmul.f32 %v765, %v792
    %v801 = vmul.f32 %v767, %v793
    %v802 = vmul.f32 %v769, %v794
    %v803 = vmul.f32 %v771, %v795
    %v804 = vmul.f32 %v717, %v796
    %v805 = vmul.f32 %v719, %v797
    %v806 = vmul.f32 %v721, %v798
    %v807 = vmul.f32 %v723, %v799
    %v808 = vmul.f32 %v725, %v800
    %v809 = vmul.f32 %v727, %v801
    %v810 = vmul.f32 %v729, %v802
    %v811 = vmul.f32 %v731, %v803
    %v812 = vrot.slane %v804, 4
    %v813 = vadd.f32 %v804, %v812
    %v814 = vrot.slane %v813, 2
    %v815 = vadd.f32 %v813, %v814
    %v816 = vrot.slane %v815, 1
    %v817 = vadd.f32 %v815, %v816
    %v818 = vrot.slane %v805, 4
    %v819 = vadd.f32 %v805, %v818
    %v820 = vrot.slane %v819, 2
    %v821 = vadd.f32 %v819, %v820
    %v822 = vrot.slane %v821, 1
    %v823 = vadd.f32 %v821, %v822
    %v824 = vrot.slane %v806, 4
    %v825 = vadd.f32 %v806, %v824
    %v826 = vrot.slane %v825, 2
    %v827 = vadd.f32 %v825, %v826
    %v828 = vrot.slane %v827, 1
    %v829 = vadd.f32 %v827, %v828
    %v830 = vrot.slane %v807, 4
    %v831 = vadd.f32 %v807, %v830
    %v832 = vrot.slane %v831, 2
    %v833 = vadd.f32 %v831, %v832
    %v834 = vrot.slane %v833, 1
    %v835 = vadd.f32 %v833, %v834
    %v836 = vrot.slane %v808, 4
    %v837 = vadd.f32 %v808, %v836
    %v838 = vrot.slane %v837, 2
    %v839 = vadd.f32 %v837, %v838
    %v840 = vrot.slane %v839, 1
    %v841 = vadd.f32 %v839, %v840
    %v842 = vrot.slane %v809, 4
    %v843 = vadd.f32 %v809, %v842
    %v844 = vrot.slane %v843, 2
    %v845 = vadd.f32 %v843, %v844
    %v846 = vrot.slane %v845, 1
    %v847 = vadd.f32 %v845, %v846
    %v848 = vrot.slane %v810, 4
    %v849 = vadd.f32 %v810, %v848
    %v850 = vrot.slane %v849, 2
    %v851 = vadd.f32 %v849, %v850
    %v852 = vrot.slane %v851, 1
    %v853 = vadd.f32 %v851, %v852
    %v854 = vrot.slane %v811, 4
    %v855 = vadd.f32 %v811, %v854
    %v856 = vrot.slane %v855, 2
    %v857 = vadd.f32 %v855, %v856
    %v858 = vrot.slane %v857, 1
    %v859 = vadd.f32 %v857, %v858
    %v860 = vrot.slane %v796, 4
    %v861 = vadd.f32 %v796, %v860
    %v862 = vrot.slane %v861, 2
    %v863 = vadd.f32 %v861, %v862
    %v864 = vrot.slane %v863, 1
    %v865 = vadd.f32 %v863, %v864
    %v866 = vrot.slane %v797, 4
    %v867 = vadd.f32 %v797, %v866
    %v868 = vrot.slane %v867, 2
    %v869 = vadd.f32 %v867, %v868
    %v870 = vrot.slane %v869, 1
    %v871 = vadd.f32 %v869, %v870
    %v872 = vrot.slane %v798, 4
    %v873 = vadd.f32 %v798, %v872
    %v874 = vrot.slane %v873, 2
    %v875 = vadd.f32 %v873, %v874
    %v876 = vrot.slane %v875, 1
    %v877 = vadd.f32 %v875, %v876
    %v878 = vrot.slane %v799, 4
    %v879 = vadd.f32 %v799, %v878
    %v880 = vrot.slane %v879, 2
    %v881 = vadd.f32 %v879, %v880
    %v882 = vrot.slane %v881, 1
    %v883 = vadd.f32 %v881, %v882
    %v884 = vrot.slane %v800, 4
    %v885 = vadd.f32 %v800, %v884
    %v886 = vrot.slane %v885, 2
    %v887 = vadd.f32 %v885, %v886
    %v888 = vrot.slane %v887, 1
    %v889 = vadd.f32 %v887, %v888
    %v890 = vrot.slane %v801, 4
    %v891 = vadd.f32 %v801, %v890
    %v892 = vrot.slane %v891, 2
    %v893 = vadd.f32 %v891, %v892
    %v894 = vrot.slane %v893, 1
    %v895 = vadd.f32 %v893, %v894
    %v896 = vrot.slane %v802, 4
    %v897 = vadd.f32 %v802, %v896
    %v898 = vrot.slane %v897, 2
    %v899 = vadd.f32 %v897, %v898
    %v900 = vrot.slane %v899, 1
    %v901 = vadd.f32 %v899, %v900
    %v902 = vrot.slane %v803, 4
    %v903 = vadd.f32 %v803, %v902
    %v904 = vrot.slane %v903, 2
    %v905 = vadd.f32 %v903, %v904
    %v906 = vrot.slane %v905, 1
    %v907 = vadd.f32 %v905, %v906
    %v908 = vadd.f32 %v865, %v587
    %v909 = vadd.f32 %v871, %v587
    %v910 = vadd.f32 %v877, %v587
    %v911 = vadd.f32 %v883, %v587
    %v912 = vadd.f32 %v889, %v587
    %v913 = vadd.f32 %v895, %v587
    %v914 = vadd.f32 %v901, %v587
    %v915 = vadd.f32 %v907, %v587
    %v916 = vrcp.pop %v908
    %v917 = vmul.f32 %v817, %v916
    %v918 = vrcp.pop %v909
    %v919 = vmul.f32 %v823, %v918
    %v920 = vrcp.pop %v910
    %v921 = vmul.f32 %v829, %v920
    %v922 = vrcp.pop %v911
    %v923 = vmul.f32 %v835, %v922
    %v924 = vrcp.pop %v912
    %v925 = vmul.f32 %v841, %v924
    %v926 = vrcp.pop %v913
    %v927 = vmul.f32 %v847, %v926
    %v928 = vrcp.pop %v914
    %v929 = vmul.f32 %v853, %v928
    %v930 = vrcp.pop %v915
    %v931 = vmul.f32 %v859, %v930
    %v940 = vrot.slane %v919, 7
    %v941 = vsel %vm621, %v940, %v917
    %v942 = vrot.slane %v921, 6
    %v943 = vsel %vm624, %v942, %v941
    %v944 = vrot.slane %v923, 5
    %v945 = vsel %vm627, %v944, %v943
    %v946 = vrot.slane %v925, 4
    %v947 = vsel %vm630, %v946, %v945
    %v948 = vrot.slane %v927, 3
    %v949 = vsel %vm633, %v948, %v947
    %v950 = vrot.slane %v929, 2
    %v951 = vsel %vm636, %v950, %v949
    %v952 = vrot.slane %v931, 1
    %v953 = vsel %vm639, %v952, %v951
    %s955 = scalar_lea.vmem [#allocation3], 8
    %956 = vst [vmem:[%s955] sm:$0xff] %v953
    // Predicated region
    $region18: #{attention_module.1} parent=1 // pred_check
      _
    $region19: #{attention_module.1} parent=1 // pred_check_branch
      %958 = sbr.rel (0) target = $region21
    $region20: #{attention_module.1} parent=1 // pred_region
      %s960 = ssub.s32 256, 256
      %961 = vsyncadd [#allocation4], %s960
      %s962 = sshll.u32 [#allocation3], 4
      %s963 = int_to_ptr.vmem [resolvable:$true] %s962
      %968 = dma.vmem_to_hbm [thread:$0]  %s963, 256, %s4, [#allocation4], 128, 128, 8
    $region21: #{attention_module.1} parent=1 // pred_fallthru
      _
    // Predicated region
    $region22: #{attention_module.1} parent=1 // pred_check
      _
    $region23: #{attention_module.1} parent=1 // pred_check_branch
      %970 = sbr.rel (0) target = $region25
    $region24: #{attention_module.1} parent=1 // pred_region
      %971 = dma.done [#allocation4], 256
    $region25: #{attention_module.1} parent=1 // pred_fallthru
      _
    %972 = vsyncpa [#allocation4], 1

</llo_original>
